<compile_context>
chip_gen: v7x
topology: tpu7x:2x2x1
jax: 0.10.0
libtpu: 0.0.40
codegen_flags: <defaults>
</compile_context>

<pallas_src>
import jax
import jax.numpy as jnp
from jax.experimental import pallas as pl
from jax.experimental.pallas import tpu as pltpu


# -----------------------------------------------------------------------------
# Kernel A: fused boundary head + mask + nm head + d1 masking + L2-normalize
#           + bm channel premix.  Channel-major blocks, pixels on the lane axis.
#
# Fused 28-row head layout (chosen so every in-kernel sublane slice starts at
# offset 0 or is a single row):
#   rows 0..2   : nm head, d1 channels
#   rows 3..9   : boundary head, b1..b7 (BGR swap folded into the weights)
#   rows 10..27 : nm head, d2..d7
#
#   x_ref    : (1, 3, TN)   RGB pixels (channel-major)
#   w_ref    : (28, 3)      fused head weights
#   bias_ref : (28, 1)      fused head biases
#   wbmT_ref : (2, 3)       bm 1x1-conv weights (premixed here; resize is linear)
# outputs:
#   bd_ref   : (1, 28, TN)  [d1*mskorg | b1..b7 | d2..d7]
#   y_ref    : (1, 2, TN)   bm-premixed, L2-normalized normals
# -----------------------------------------------------------------------------
def joint_head_kernel(x_ref, w_ref, bias_ref, wbmT_ref, bd_ref, y_ref):
    x = x_ref[0]                                               # (3, TN)

    # Both heads in one MXU matmul (K=3) — MXU is otherwise idle in this kernel.
    raw = jnp.dot(w_ref[...], x, preferred_element_type=jnp.float32)   # (28, TN)
    bias = bias_ref[...]                                       # (28, 1)

    # mskorg = (sigmoid(b1 logit) > 0.5)  <=>  (logit > 0); b1 logit is row 3.
    mskorg = ((raw[3:4, :] + bias[3:4, :]) > 0.0).astype(jnp.float32)   # (1, TN)

    row = jax.lax.broadcasted_iota(jnp.int32, raw.shape, 0)
    is_b = jnp.logical_and(row >= 3, row < 10)
    # nm head runs on extracted = mskorg * images; a 1x1 conv commutes with a
    # per-pixel scale:  Wd @ (m*x) + bd == m * (Wd @ x) + bd.
    pre = jnp.where(is_b, raw, mskorg * raw) + bias
    sig = jax.nn.sigmoid(pre)                                  # (28, TN)

    # d1 *= mskorg (rows 0..2) — sublane-iota select instead of a concat.
    out = jnp.where(row < 3, sig * mskorg, sig)
    bd_ref[0] = out

    # input_nm = d1 / sqrt(sum_ch d1^2 + 1e-8); the +1e-8 keeps norm > 0, so the
    # PyTorch nonzero() indexing selects every pixel -> plain per-pixel scale.
    d1m = out[0:3, :]                                          # offset-0 slice
    inv = jax.lax.rsqrt(jnp.sum(d1m * d1m, axis=0, keepdims=True) + 1e-8)
    # bm 1x1 conv commutes with the bilinear resize -> premix 3->2 channels now
    # so kernel B only resizes 2 channels (no 3-channel nm HBM round-trip).
    y_ref[0] = jnp.dot(wbmT_ref[...], d1m,
                       preferred_element_type=jnp.float32) * inv


# -----------------------------------------------------------------------------
# Kernel B: bilinear resize (align_corners=True) of the premixed 2-channel map
#           + bm head bias + tanh.  Per channel: R = Ry @ (Y @ Rx^T).
#   y_ref   : (1, 2*H, W)   premixed normals, channel-stacked rows
#   ry_ref  : (Hout, H)     row interpolation matrix
#   rxT_ref : (W, TW)       column interpolation matrix block (transposed)
#   bbm_ref : (2,)  SMEM    bm head bias
#   o_ref   : (1, 2, Hout, TW)
# -----------------------------------------------------------------------------
def resize_bm_kernel(y_ref, ry_ref, rxT_ref, bbm_ref, o_ref):
    ry = ry_ref[...]                                           # (Hout, H)
    h = ry.shape[1]
    # Rx pass with both channels batched into M: (2H, W) @ (W, TW).
    t = jnp.dot(y_ref[0], rxT_ref[...], preferred_element_type=jnp.float32)
    for j in range(2):
        rj = jnp.dot(ry, t[j * h:(j + 1) * h, :],
                     preferred_element_type=jnp.float32)       # (Hout, TW)
        o_ref[0, j] = jnp.tanh(rj + bbm_ref[j])


# -----------------------------------------------------------------------------
# Host-side helpers.
# -----------------------------------------------------------------------------
def _interp_matrix(out_size, in_size):
    """Bilinear (align_corners=True) sampling weights: (out, in)."""
    if out_size == 1:
        # PyTorch align_corners=True with output size 1 samples index 0.
        return jnp.zeros((1, in_size), jnp.float32).at[0, 0].set(1.0)
    i = jnp.arange(out_size, dtype=jnp.float32)
    src = i * (in_size - 1) / (out_size - 1)
    i0 = jnp.clip(jnp.floor(src).astype(jnp.int32), 0, in_size - 1)
    i1 = jnp.clip(i0 + 1, 0, in_size - 1)
    frac = src - i0.astype(jnp.float32)
    m = jnp.zeros((out_size, in_size), jnp.float32)
    m = m.at[jnp.arange(out_size), i0].add(1.0 - frac)
    m = m.at[jnp.arange(out_size), i1].add(frac)
    return m


def _pick_lane_tile(n, cap=16384):
    """(tile, num_blocks): largest multiple-of-128 divisor of n up to cap.
    Fallback: full dim (always legal) for n <= cap, ragged cdiv grid otherwise
    (pure per-pixel kernel, so masked boundary writes are safe)."""
    best = None
    for t in range(128, min(n, cap) + 1, 128):
        if n % t == 0:
            best = t
    if best is not None:
        return best, n // best
    if n <= cap:
        return n, 1
    return cap, pl.cdiv(n, cap)


def _pick_wout_tile(wout, cap=2048):
    """Largest multiple-of-128 divisor of wout up to cap; fallback = full dim."""
    best = None
    for t in range(128, min(wout, cap) + 1, 128):
        if wout % t == 0:
            best = t
    return best if best is not None else wout


def init_params(key):
    ks = jax.random.split(key, 6)
    return {
        "wb":  0.6 * jax.random.normal(ks[0], (3, 7),  jnp.float32),
        "bb":  0.1 * jax.random.normal(ks[1], (1, 7),  jnp.float32),
        "wd":  0.6 * jax.random.normal(ks[2], (3, 21), jnp.float32),
        "bd":  0.1 * jax.random.normal(ks[3], (1, 21), jnp.float32),
        "wbm": 0.6 * jax.random.normal(ks[4], (3, 2),  jnp.float32),
        "bbm": 0.1 * jax.random.normal(ks[5], (1, 2),  jnp.float32),
    }


def nm_u2net_joint_forward(images, bm_img_size, params):
    B, C, H, W = images.shape
    assert C == 3
    Hout, Wout = bm_img_size
    HW = H * W

    # NCHW is already channel-major; flatten spatial dims onto the lane axis.
    x = images.reshape(B, 3, HW)

    # Fused 28-row head weights. BGR swap (images[:, [2,1,0]]) folded into the
    # boundary rows so the kernel acts on RGB directly.
    wbT = params["wb"][::-1, :].T                     # (7, 3)
    wdT = params["wd"].T                              # (21, 3)
    w28 = jnp.concatenate([wdT[0:3], wbT, wdT[3:]], axis=0)        # (28, 3)
    bb = params["bb"].reshape(7, 1)
    bd = params["bd"].reshape(21, 1)
    bias28 = jnp.concatenate([bd[0:3], bb, bd[3:]], axis=0)        # (28, 1)
    wbmT = params["wbm"].T                            # (2, 3)  bm premix weights
    bbm = params["bbm"].reshape(2)                    # (2,)    bm bias -> SMEM (kernel B)

    TN, nT = _pick_lane_tile(HW)
    grid_a = (B, nT)

    # ---- Kernel A: fused heads + masking + normalization + bm premix --------
    bd_out, y2 = pl.pallas_call(
        joint_head_kernel,
        out_shape=(
            jax.ShapeDtypeStruct((B, 28, HW), jnp.float32),
            jax.ShapeDtypeStruct((B, 2,  HW), jnp.float32),
        ),
        grid=grid_a,
        in_specs=[
            pl.BlockSpec((1, 3, TN), lambda b, t: (b, 0, t)),
            pl.BlockSpec((28, 3),    lambda b, t: (0, 0)),
            pl.BlockSpec((28, 1),    lambda b, t: (0, 0)),
            pl.BlockSpec((2, 3),     lambda b, t: (0, 0)),
        ],
        out_specs=(
            pl.BlockSpec((1, 28, TN), lambda b, t: (b, 0, t)),
            pl.BlockSpec((1, 2,  TN), lambda b, t: (b, 0, t)),
        ),
        compiler_params=pltpu.CompilerParams(
            dimension_semantics=("parallel", "parallel")),
    )(x, w28, bias28, wbmT)

    # Channel-major output reshapes straight back to NCHW (no transposes).
    bd_nchw = bd_out.reshape(B, 28, H, W)
    d1 = bd_nchw[:, 0:3]                                        # masked d1
    b_list = [bd_nchw[:, 3 + k:4 + k] for k in range(7)]        # b1..b7
    d_list = [d1] + [bd_nchw[:, 10 + 3 * k:13 + 3 * k] for k in range(6)]  # d1..d7

    # ---- Kernel B: fused bilinear resize + bm head finish --------------------
    ry = _interp_matrix(Hout, H)                      # (Hout, H)
    rxT = _interp_matrix(Wout, W).T                   # (W, Wout)
    y2r = y2.reshape(B, 2 * H, W)                     # channel-stacked rows (free)

    TW = _pick_wout_tile(Wout)
    grid_b = (B, Wout // TW)

    pred_bm = pl.pallas_call(
        resize_bm_kernel,
        out_shape=jax.ShapeDtypeStruct((B, 2, Hout, Wout), jnp.float32),
        grid=grid_b,
        in_specs=[
            pl.BlockSpec((1, 2 * H, W), lambda b, w: (b, 0, 0)),
            pl.BlockSpec((Hout, H),     lambda b, w: (0, 0)),
            pl.BlockSpec((W, TW),       lambda b, w: (0, w)),
            pl.BlockSpec(memory_space=pltpu.MemorySpace.SMEM),
        ],
        out_specs=pl.BlockSpec((1, 2, Hout, TW), lambda b, w: (b, 0, 0, w)),
        compiler_params=pltpu.CompilerParams(
            dimension_semantics=("parallel", "parallel")),
    )(y2r, ry, rxT, bbm)

    # (b1..b7, d1..d7, pred_bm) — same 15-tuple as the PyTorch module.
    return tuple(b_list) + tuple(d_list) + (pred_bm,)


if __name__ == "__main__":
    key = jax.random.PRNGKey(0)
    k_img, k_par = jax.random.split(key)

    images = jax.random.uniform(k_img, (2, 3, 16, 16), jnp.float32)  # NCHW
    bm_img_size = (8, 8)
    params = init_params(k_par)

    outs = nm_u2net_joint_forward(images, bm_img_size, params)
    outs = jax.block_until_ready(outs)

    assert len(outs) == 15
    assert outs[0].shape == (2, 1, 16, 16)    # b1
    assert outs[7].shape == (2, 3, 16, 16)    # d1 (masked)
    assert outs[14].shape == (2, 2, 8, 8)     # pred_bm
    print("KERNEL_OK")
</pallas_src>

<mosaic_0001>
module attributes {stable_mosaic.version = 11 : i64} {
  func.func @joint_head_kernel(%arg0: i32, %arg1: i32, %arg2: memref<1x3x256xf32, #tpu.memory_space<vmem>>, %arg3: memref<28x3xf32, #tpu.memory_space<vmem>>, %arg4: memref<28x1xf32, #tpu.memory_space<vmem>>, %arg5: memref<2x3xf32, #tpu.memory_space<vmem>>, %arg6: memref<1x28x256xf32, #tpu.memory_space<vmem>>, %arg7: memref<1x2x256xf32, #tpu.memory_space<vmem>>) attributes {dimension_semantics = [#tpu.dimension_semantics<parallel>, #tpu.dimension_semantics<parallel>], iteration_bounds = array<i64: 2, 1>, scalar_prefetch = 0 : i64, scratch_operands = 0 : i64, tpu.core_type = #tpu.core_type<tc>, window_params = [{transform_indices = @transform_0, window_bounds = array<i64: 1, 3, 256>}, {pipeline_mode = #tpu.pipeline_mode<synchronous>, transform_indices = @transform_1, window_bounds = array<i64: 28, 3>}, {pipeline_mode = #tpu.pipeline_mode<synchronous>, transform_indices = @transform_2, window_bounds = array<i64: 28, 1>}, {pipeline_mode = #tpu.pipeline_mode<synchronous>, transform_indices = @transform_3, window_bounds = array<i64: 2, 3>}, {transform_indices = @transform_4, window_bounds = array<i64: 1, 28, 256>}, {transform_indices = @transform_5, window_bounds = array<i64: 1, 2, 256>}]} {
    %c0 = arith.constant 0 : index
    %c0_0 = arith.constant 0 : index
    %c0_1 = arith.constant 0 : index
    %0 = vector.load %arg2[%c0, %c0_0, %c0_1] : memref<1x3x256xf32, #tpu.memory_space<vmem>>, vector<1x3x256xf32>
    %1 = vector.shape_cast %0 : vector<1x3x256xf32> to vector<3x256xf32>
    %c0_2 = arith.constant 0 : index
    %c0_3 = arith.constant 0 : index
    %2 = vector.load %arg3[%c0_2, %c0_3] : memref<28x3xf32, #tpu.memory_space<vmem>>, vector<28x3xf32>
    %cst = arith.constant dense<0.000000e+00> : vector<28x256xf32>
    %3 = tpu.matmul %2, %1, %cst {dimension_numbers = #tpu.dot_dimension_numbers<[1], [0], [0], [1], [0, 0, 1, 1], [], []>} : vector<28x3xf32>, vector<3x256xf32>, vector<28x256xf32> -> vector<28x256xf32>
    %c0_4 = arith.constant 0 : index
    %c0_5 = arith.constant 0 : index
    %4 = vector.load %arg4[%c0_4, %c0_5] : memref<28x1xf32, #tpu.memory_space<vmem>>, vector<28x1xf32>
    %5 = vector.extract_strided_slice %3 {offsets = [3, 0], sizes = [1, 256], strides = [1, 1]} : vector<28x256xf32> to vector<1x256xf32>
    %6 = vector.extract_strided_slice %4 {offsets = [3, 0], sizes = [1, 1], strides = [1, 1]} : vector<28x1xf32> to vector<1x1xf32>
    %7 = vector.broadcast %6 : vector<1x1xf32> to vector<1x256xf32>
    %8 = arith.addf %5, %7 : vector<1x256xf32>
    %cst_6 = arith.constant 0.000000e+00 : f32
    %9 = vector.broadcast %cst_6 : f32 to vector<1x256xf32>
    %10 = arith.cmpf ogt, %8, %9 : vector<1x256xf32>
    %11 = arith.extui %10 : vector<1x256xi1> to vector<1x256xi32>
    %12 = arith.sitofp %11 : vector<1x256xi32> to vector<1x256xf32>
    %13 = tpu.iota {dimensions = array<i32: 0>} : vector<28x256xi32>
    %c3_i32 = arith.constant 3 : i32
    %14 = vector.broadcast %c3_i32 : i32 to vector<28x256xi32>
    %15 = arith.cmpi sge, %13, %14 : vector<28x256xi32>
    %c10_i32 = arith.constant 10 : i32
    %16 = vector.broadcast %c10_i32 : i32 to vector<28x256xi32>
    %17 = arith.cmpi slt, %13, %16 : vector<28x256xi32>
    %18 = arith.andi %15, %17 : vector<28x256xi1>
    %19 = vector.broadcast %12 : vector<1x256xf32> to vector<28x256xf32>
    %20 = arith.mulf %19, %3 : vector<28x256xf32>
    %21 = arith.select %18, %3, %20 : vector<28x256xi1>, vector<28x256xf32>
    %22 = vector.broadcast %4 : vector<28x1xf32> to vector<28x256xf32>
    %23 = arith.addf %21, %22 : vector<28x256xf32>
    %24 = arith.negf %23 : vector<28x256xf32>
    %25 = math.exp %24 : vector<28x256xf32>
    %cst_7 = arith.constant 1.000000e+00 : f32
    %26 = vector.broadcast %cst_7 : f32 to vector<28x256xf32>
    %27 = arith.addf %26, %25 : vector<28x256xf32>
    %28 = arith.divf %26, %27 : vector<28x256xf32>
    %c3_i32_8 = arith.constant 3 : i32
    %29 = vector.broadcast %c3_i32_8 : i32 to vector<28x256xi32>
    %30 = arith.cmpi slt, %13, %29 : vector<28x256xi32>
    %31 = vector.broadcast %12 : vector<1x256xf32> to vector<28x256xf32>
    %32 = arith.mulf %28, %31 : vector<28x256xf32>
    %33 = arith.select %30, %32, %28 : vector<28x256xi1>, vector<28x256xf32>
    %c0_9 = arith.constant 0 : index
    %c0_10 = arith.constant 0 : index
    %c0_11 = arith.constant 0 : index
    %34 = vector.load %arg6[%c0_9, %c0_10, %c0_11] : memref<1x28x256xf32, #tpu.memory_space<vmem>>, vector<1x28x256xf32>
    %35 = vector.shape_cast %34 : vector<1x28x256xf32> to vector<28x256xf32>
    %36 = vector.shape_cast %33 : vector<28x256xf32> to vector<1x28x256xf32>
    tpu.vector_store %arg6[%c0_9, %c0_10, %c0_11], %36 {strides = array<i32>} : memref<1x28x256xf32, #tpu.memory_space<vmem>>, vector<1x28x256xf32>,
    %37 = vector.extract_strided_slice %33 {offsets = [0, 0], sizes = [3, 256], strides = [1, 1]} : vector<28x256xf32> to vector<3x256xf32>
    %38 = arith.mulf %37, %37 : vector<3x256xf32>
    %cst_12 = arith.constant dense<0.000000e+00> : vector<256xf32>
    %39 = vector.multi_reduction <add>, %38, %cst_12 [0] : vector<3x256xf32> to vector<256xf32>
    %40 = vector.shape_cast %39 : vector<256xf32> to vector<1x256xf32>
    %cst_13 = arith.constant 9.99999993E-9 : f32
    %41 = vector.broadcast %cst_13 : f32 to vector<1x256xf32>
    %42 = arith.addf %40, %41 : vector<1x256xf32>
    %43 = math.rsqrt %42 : vector<1x256xf32>
    %c0_14 = arith.constant 0 : index
    %c0_15 = arith.constant 0 : index
    %44 = vector.load %arg5[%c0_14, %c0_15] : memref<2x3xf32, #tpu.memory_space<vmem>>, vector<2x3xf32>
    %cst_16 = arith.constant dense<0.000000e+00> : vector<2x256xf32>
    %45 = tpu.matmul %44, %37, %cst_16 {dimension_numbers = #tpu.dot_dimension_numbers<[1], [0], [0], [1], [0, 0, 1, 1], [], []>} : vector<2x3xf32>, vector<3x256xf32>, vector<2x256xf32> -> vector<2x256xf32>
    %46 = vector.broadcast %43 : vector<1x256xf32> to vector<2x256xf32>
    %47 = arith.mulf %45, %46 : vector<2x256xf32>
    %c0_17 = arith.constant 0 : index
    %c0_18 = arith.constant 0 : index
    %c0_19 = arith.constant 0 : index
    %48 = vector.load %arg7[%c0_17, %c0_18, %c0_19] : memref<1x2x256xf32, #tpu.memory_space<vmem>>, vector<1x2x256xf32>
    %49 = vector.shape_cast %48 : vector<1x2x256xf32> to vector<2x256xf32>
    %50 = vector.shape_cast %47 : vector<2x256xf32> to vector<1x2x256xf32>
    tpu.vector_store %arg7[%c0_17, %c0_18, %c0_19], %50 {strides = array<i32>} : memref<1x2x256xf32, #tpu.memory_space<vmem>>, vector<1x2x256xf32>,
    return
  }
  func.func @transform_0(%arg0: i32, %arg1: i32) -> (i32, i32, i32) {
    %c0_i32 = arith.constant 0 : i32
    %c0_i32_0 = arith.constant 0 : i32
    return %arg0, %c0_i32, %arg1 : i32, i32, i32
  }
  func.func @transform_1(%arg0: i32, %arg1: i32) -> (i32, i32) {
    %c0_i32 = arith.constant 0 : i32
    %c0_i32_0 = arith.constant 0 : i32
    %c0_i32_1 = arith.constant 0 : i32
    return %c0_i32, %c0_i32_0 : i32, i32
  }
  func.func @transform_2(%arg0: i32, %arg1: i32) -> (i32, i32) {
    %c0_i32 = arith.constant 0 : i32
    %c0_i32_0 = arith.constant 0 : i32
    %c0_i32_1 = arith.constant 0 : i32
    return %c0_i32, %c0_i32_0 : i32, i32
  }
  func.func @transform_3(%arg0: i32, %arg1: i32) -> (i32, i32) {
    %c0_i32 = arith.constant 0 : i32
    %c0_i32_0 = arith.constant 0 : i32
    %c0_i32_1 = arith.constant 0 : i32
    return %c0_i32, %c0_i32_0 : i32, i32
  }
  func.func @transform_4(%arg0: i32, %arg1: i32) -> (i32, i32, i32) {
    %c0_i32 = arith.constant 0 : i32
    %c0_i32_0 = arith.constant 0 : i32
    return %arg0, %c0_i32, %arg1 : i32, i32, i32
  }
  func.func @transform_5(%arg0: i32, %arg1: i32) -> (i32, i32, i32) {
    %c0_i32 = arith.constant 0 : i32
    %c0_i32_0 = arith.constant 0 : i32
    return %arg0, %c0_i32, %arg1 : i32, i32, i32
  }
}

</mosaic_0001>

<llo_original>
// kernel: tpu_custom_call.1
$region0: #{tpu_custom_call.1}
  #allocation0 [shape = 'u32[]', space=smem, size = 0x4, offset = 0x4, fixed_abs, tag = 'smem constant byte address 0x4 - core index']
  #allocation1 [shape = 'u32[144,128]{1,0:T(1,128)}', space=vmem, size = 0x12000, scoped, tag = 'internal scratch']
  %s0 = inlined_call_operand.vmem [shape: f32[2,3,256], index: 0, kind: input, shape index: {}]
  %s1 = inlined_call_operand.vmem [shape: f32[28,3], index: 1, kind: input, shape index: {}]
  %s2 = inlined_call_operand.vmem [shape: f32[28,1], index: 2, kind: input, shape index: {}]
  %s3 = inlined_call_operand.vmem [shape: f32[2,3], index: 3, kind: input, shape index: {}]
  %s4 = inlined_call_operand.vmem [shape: f32[2,28,256], index: 4, kind: output, shape index: {0}]
  %s5 = inlined_call_operand.hbm [shape: f32[2,2,256], index: 5, kind: output, shape index: {1}]
  %6 = xla_tuple %s4, %s5
  %s7 = sld [smem:[#allocation0]]
  $region57: #{tpu_custom_call.1} parent=0
    _
  %s9 = ssub.s32 1, %s7
  %s10 = scalar_select 0, %s9, %s7
  $region1: #{tpu_custom_call.1} parent=0
    #allocation2 [shape = 'u8[4096]{0}', space=vmem, size = 0x1000, scoped, tag = 'output window, operand 1']
    #allocation3 [shape = 's32[2]{0}', space=sflag, size = 0x8, scoped, tag = 'scoped memory for tpu_custom_call.1']
    %11 = vsyncpa [#allocation3], 0
    %s12 = scalar_lea.sflag [#allocation3], 1
    %13 = vsyncpa %s12, 0
    loop: start=0, step=1, limit=4
    $region2: #{tpu_custom_call.1} parent=1 // loop_pre_header
      _
    $region3: #{tpu_custom_call.1} parent=1 // loop_header
      %s15 = sphi 0, %s19
      %p16 = scmp.ge.s32.totalorder %s15, 4
      %s22 = sphi 0, %s34
      %s23 = sphi 0, %s30
      %s24 = sphi 0, %s22
      %s25 = sphi 0, %s23
      %s26 = sphi 0, %s24
      %s27 = sphi 0, %s25
      %s39 = sphi 0, %s41
      %s42 = sphi 0, %s39
      %s43 = sphi 0, %s42
      %s59 = sphi 0, %s43
      %s63 = sphi 0, %s63
      %s65 = sphi 0, %s63
      %s66 = sphi 0, %s65
      %s80 = sphi 0, %s66
      %s84 = sphi 0, %s84
      %s86 = sphi 0, %s84
      %s87 = sphi 0, %s86
      %s101 = sphi 0, %s87
      %s105 = sphi 0, %s105
      %s107 = sphi 0, %s105
      %s108 = sphi 0, %s107
      %s122 = sphi 0, %s108
      %s130 = sphi 0, %s132
      %s133 = sphi 0, %s130
      %s134 = sphi 0, %s133
      %s150 = sphi 0, %s134
      %s158 = sphi 0, %s160
      %s161 = sphi 0, %s158
      %s162 = sphi 0, %s161
      %s178 = sphi 0, %s162
    $region4: #{tpu_custom_call.1} parent=1 // loop_header_branch
      %18 = sbr.rel (%p16) target = $region8
    $region5: #{tpu_custom_call.1} parent=1 // loop_body
      %s20 = ssub.s32 %s15, 1
      %s21 = ssub.s32 %s15, 2
      %s28 = sadd.s32 1, %s23
      %p29 = scmp.ge.s32.totalorder %s28, 1
      %s30 = scalar_select %p29, 0, %s28
      %s31 = sadd.s32 1, %s22
      %s32 = scalar_select %p29, %s31, %s22
      %p33 = scmp.ge.s32.totalorder %s32, 2
      %s34 = scalar_select %p33, 0, %s32
      %s35 = ssub.s32 %s22, %s34
      %s36 = ssub.s32 %s23, %s30
      %s37 = sor.u32 %s35, %s36
      %p38 = scmp.eq.s32.totalorder %s37, 0
      %s40 = sadd.s32 %s39, 1
      %s41 = scalar_select %p38, %s39, %s40
      %p44 = pneg %p38
      %p45 = scmp.eq.s32.totalorder %s15, 1
      %p46 = por %p44, %p45
      %p47 = scmp.ne.s32.totalorder %s39, %s42
      %p48 = scmp.eq.s32.totalorder %s15, 0
      %p49 = por %p47, %p48
      %p50 = scmp.ne.s32.totalorder %s39, %s42
      %p51 = scmp.eq.s32.totalorder %s20, 1
      %p52 = por %p50, %p51
      %p53 = scmp.ne.s32.totalorder %s42, %s43
      %p54 = scmp.eq.s32.totalorder %s20, 0
      %p55 = por %p53, %p54
      %p56 = scmp.ne.s32.totalorder %s42, %s43
      %p57 = scmp.eq.s32.totalorder %s21, 1
      %p58 = por %p56, %p57
      %p60 = scmp.ne.s32.totalorder %s43, %s59
      %p61 = scmp.eq.s32.totalorder %s21, 0
      %p62 = por %p60, %p61
      %s64 = sadd.s32 %s63, 1
      %p67 = scmp.eq.s32.totalorder %s15, 1
      %p68 = scmp.ne.s32.totalorder %s63, %s65
      %p69 = scmp.eq.s32.totalorder %s15, 0
      %p70 = por %p68, %p69
      %p71 = scmp.ne.s32.totalorder %s63, %s65
      %p72 = scmp.eq.s32.totalorder %s20, 1
      %p73 = por %p71, %p72
      %p74 = scmp.ne.s32.totalorder %s65, %s66
      %p75 = scmp.eq.s32.totalorder %s20, 0
      %p76 = por %p74, %p75
      %p77 = scmp.ne.s32.totalorder %s65, %s66
      %p78 = scmp.eq.s32.totalorder %s21, 1
      %p79 = por %p77, %p78
      %p81 = scmp.ne.s32.totalorder %s66, %s80
      %p82 = scmp.eq.s32.totalorder %s21, 0
      %p83 = por %p81, %p82
      %s85 = sadd.s32 %s84, 1
      %p88 = scmp.eq.s32.totalorder %s15, 1
      %p89 = scmp.ne.s32.totalorder %s84, %s86
      %p90 = scmp.eq.s32.totalorder %s15, 0
      %p91 = por %p89, %p90
      %p92 = scmp.ne.s32.totalorder %s84, %s86
      %p93 = scmp.eq.s32.totalorder %s20, 1
      %p94 = por %p92, %p93
      %p95 = scmp.ne.s32.totalorder %s86, %s87
      %p96 = scmp.eq.s32.totalorder %s20, 0
      %p97 = por %p95, %p96
      %p98 = scmp.ne.s32.totalorder %s86, %s87
      %p99 = scmp.eq.s32.totalorder %s21, 1
      %p100 = por %p98, %p99
      %p102 = scmp.ne.s32.totalorder %s87, %s101
      %p103 = scmp.eq.s32.totalorder %s21, 0
      %p104 = por %p102, %p103
      %s106 = sadd.s32 %s105, 1
      %p109 = scmp.eq.s32.totalorder %s15, 1
      %p110 = scmp.ne.s32.totalorder %s105, %s107
      %p111 = scmp.eq.s32.totalorder %s15, 0
      %p112 = por %p110, %p111
      %p113 = scmp.ne.s32.totalorder %s105, %s107
      %p114 = scmp.eq.s32.totalorder %s20, 1
      %p115 = por %p113, %p114
      %p116 = scmp.ne.s32.totalorder %s107, %s108
      %p117 = scmp.eq.s32.totalorder %s20, 0
      %p118 = por %p116, %p117
      %p119 = scmp.ne.s32.totalorder %s107, %s108
      %p120 = scmp.eq.s32.totalorder %s21, 1
      %p121 = por %p119, %p120
      %p123 = scmp.ne.s32.totalorder %s108, %s122
      %p124 = scmp.eq.s32.totalorder %s21, 0
      %p125 = por %p123, %p124
      %s126 = ssub.s32 %s22, %s34
      %s127 = ssub.s32 %s23, %s30
      %s128 = sor.u32 %s126, %s127
      %p129 = scmp.eq.s32.totalorder %s128, 0
      %s131 = sadd.s32 %s130, 1
      %s132 = scalar_select %p129, %s130, %s131
      %p135 = pneg %p129
      %p136 = scmp.eq.s32.totalorder %s15, 1
      %p137 = por %p135, %p136
      %p138 = scmp.ne.s32.totalorder %s130, %s133
      %p139 = scmp.eq.s32.totalorder %s15, 0
      %p140 = por %p138, %p139
      %p141 = scmp.ne.s32.totalorder %s130, %s133
      %p142 = scmp.eq.s32.totalorder %s20, 1
      %p143 = por %p141, %p142
      %p144 = scmp.ne.s32.totalorder %s133, %s134
      %p145 = scmp.eq.s32.totalorder %s20, 0
      %p146 = por %p144, %p145
      %p147 = scmp.ne.s32.totalorder %s133, %s134
      %p148 = scmp.eq.s32.totalorder %s21, 1
      %p149 = por %p147, %p148
      %p151 = scmp.ne.s32.totalorder %s134, %s150
      %p152 = scmp.eq.s32.totalorder %s21, 0
      %p153 = por %p151, %p152
      %s154 = ssub.s32 %s22, %s34
      %s155 = ssub.s32 %s23, %s30
      %s156 = sor.u32 %s154, %s155
      %p157 = scmp.eq.s32.totalorder %s156, 0
      %s159 = sadd.s32 %s158, 1
      %s160 = scalar_select %p157, %s158, %s159
      %p163 = pneg %p157
      %p164 = scmp.eq.s32.totalorder %s15, 1
      %p165 = por %p163, %p164
      %p166 = scmp.ne.s32.totalorder %s158, %s161
      %p167 = scmp.eq.s32.totalorder %s15, 0
      %p168 = por %p166, %p167
      %p169 = scmp.ne.s32.totalorder %s158, %s161
      %p170 = scmp.eq.s32.totalorder %s20, 1
      %p171 = por %p169, %p170
      %p172 = scmp.ne.s32.totalorder %s161, %s162
      %p173 = scmp.eq.s32.totalorder %s20, 0
      %p174 = por %p172, %p173
      %p175 = scmp.ne.s32.totalorder %s161, %s162
      %p176 = scmp.eq.s32.totalorder %s21, 1
      %p177 = por %p175, %p176
      %p179 = scmp.ne.s32.totalorder %s162, %s178
      %p180 = scmp.eq.s32.totalorder %s21, 0
      %p181 = por %p179, %p180
      %p182 = scmp.le.s32.totalorder 1, %s15
      %p183 = scmp.lt.s32.totalorder %s15, 3
      %p184 = pnand %p182, %p183
      %p185 = pneg %p184
      // Predicated region
      $region9: #{tpu_custom_call.1} parent=5 // pred_check
        _
      $region10: #{tpu_custom_call.1} parent=5 // pred_check_branch
        %187 = sbr.rel (%p184) target = $region12
      $region11: #{tpu_custom_call.1} parent=5 // pred_region
        %s188 = ssub.s32 %s15, 1
        // Predicated region
        $region13: #{tpu_custom_call.1} parent=11 // pred_check
          %p189 = pneg %p76
        $region14: #{tpu_custom_call.1} parent=11 // pred_check_branch
          %191 = sbr.rel (%p189) target = $region16
        $region15: #{tpu_custom_call.1} parent=11 // pred_region
          _
        $region16: #{tpu_custom_call.1} parent=11 // pred_fallthru
          _
        // Predicated region
        $region17: #{tpu_custom_call.1} parent=11 // pred_check
          %p192 = pneg %p97
        $region18: #{tpu_custom_call.1} parent=11 // pred_check_branch
          %194 = sbr.rel (%p192) target = $region20
        $region19: #{tpu_custom_call.1} parent=11 // pred_region
          _
        $region20: #{tpu_custom_call.1} parent=11 // pred_fallthru
          _
        // Predicated region
        $region21: #{tpu_custom_call.1} parent=11 // pred_check
          %p195 = pneg %p118
        $region22: #{tpu_custom_call.1} parent=11 // pred_check_branch
          %197 = sbr.rel (%p195) target = $region24
        $region23: #{tpu_custom_call.1} parent=11 // pred_region
          _
        $region24: #{tpu_custom_call.1} parent=11 // pred_fallthru
          _
      $region12: #{tpu_custom_call.1} parent=5 // pred_fallthru
        _
      %p198 = scmp.lt.s32.totalorder %s15, 2
      // Predicated region
      $region25: #{tpu_custom_call.1} parent=5 // pred_check
        %p199 = pneg %p198
      $region26: #{tpu_custom_call.1} parent=5 // pred_check_branch
        %201 = sbr.rel (%p199) target = $region28
      $region27: #{tpu_custom_call.1} parent=5 // pred_region
        // Predicated region
        $region29: #{tpu_custom_call.1} parent=27 // pred_check
          %p202 = pneg %p49
        $region30: #{tpu_custom_call.1} parent=27 // pred_check_branch
          %204 = sbr.rel (%p202) target = $region32
        $region31: #{tpu_custom_call.1} parent=27 // pred_region
          %s205 = smul.u32 2, %s23
          %p206 = scmp.lt.s32.totalorder %s22, 1
          %s207 = scalar_select %p206, %s22, 1
          %p208 = scmp.lt.s32.totalorder %s205, 1
          %s209 = scalar_select %p208, %s205, 1
          %s210 = smul.addr %s207, 2
          %s211 = sadd.s32 %s209, %s210
          %s212 = smul.addr %s211, 4
          %s213 = scalar_lea.vmem %s0, %s212
          %s214 = smul.u32 2, %s23
        $region32: #{tpu_custom_call.1} parent=27 // pred_fallthru
          _
      $region28: #{tpu_custom_call.1} parent=5 // pred_fallthru
        _
      %p215 = scmp.le.s32.totalorder 1, %s15
      %p216 = scmp.lt.s32.totalorder %s15, 3
      %p217 = pnand %p215, %p216
      %p218 = pneg %p217
      // Predicated region
      $region33: #{tpu_custom_call.1} parent=5 // pred_check
        _
      $region34: #{tpu_custom_call.1} parent=5 // pred_check_branch
        %220 = sbr.rel (%p217) target = $region36
      $region35: #{tpu_custom_call.1} parent=5 // pred_region
        %s221 = ssub.s32 %s15, 1
        %s222 = smul.u32 2, %s25
        %p223 = scmp.lt.s32.totalorder %s24, 1
        %s224 = scalar_select %p223, %s24, 1
        %p225 = scmp.lt.s32.totalorder %s222, 1
        %s226 = scalar_select %p225, %s222, 1
        %s227 = smul.addr %s224, 2
        %s228 = sadd.s32 %s226, %s227
        %s229 = smul.addr %s228, 4
        %s230 = scalar_lea.vmem %s0, %s229
        %p231 = pneg %p55
        %p232 = pneg %p52
        %p233 = pneg %p76
        %p234 = pneg %p73
        %p235 = pneg %p97
        %p236 = pneg %p94
        %p237 = pneg %p118
        %p238 = pneg %p115
        %p239 = pneg %p146
        %p240 = pneg %p143
        %s241 = smul.u32 2, %s25
        %p242 = scmp.lt.s32.totalorder %s24, 1
        %s243 = scalar_select %p242, %s24, 1
        %p244 = scmp.lt.s32.totalorder %s241, 1
        %s245 = scalar_select %p244, %s241, 1
        %s246 = smul.addr %s243, 8
        %s247 = sadd.s32 %s245, %s246
        %s248 = smul.addr %s247, 8
        %s249 = scalar_lea.vmem %s4, %s248
        %p250 = pneg %p174
        %p251 = pneg %p171
        %s252 = sand.u32 %s161, 1
        %s253 = scalar_lea.sflag [#allocation3], %s252
        %s254 = sand.u32 %s161, 1
        %s255 = smul.addr %s254, 4
        %s256 = scalar_lea.vmem [#allocation2], %s255
        %s257 = smul.u32 2, %s25
        %p258 = scmp.lt.s32.totalorder %s24, 1
        %s259 = scalar_select %p258, %s24, 1
        %p260 = scmp.lt.s32.totalorder %s257, 1
        %s261 = scalar_select %p260, %s257, 1
        %s262 = smul.addr %s259, 2
        %s263 = sadd.s32 %s261, %s262
        %s264 = smul.addr %s263, 4
        %s265 = scalar_lea.vmem %s0, %s264
        %s266 = smul.u32 2, %s25
        %s267 = smul.u32 2, %s25
        %p268 = scmp.lt.s32.totalorder %s24, 1
        %s269 = scalar_select %p268, %s24, 1
        %p270 = scmp.lt.s32.totalorder %s267, 1
        %s271 = scalar_select %p270, %s267, 1
        %s272 = smul.addr %s269, 8
        %s273 = sadd.s32 %s271, %s272
        %s274 = smul.addr %s273, 8
        %s275 = scalar_lea.vmem %s4, %s274
        %s276 = smul.u32 2, %s25
        %s277 = smul.u32 2, %s25
        %v278 = vld [vmem:[%s265] sm:$0x77]
        %v279 = vld [vmem:[%s1] sm:$0xff]
        %v280 = vld [vmem:[%s1 + $0x8] sm:$0xff]
        %v281 = vld [vmem:[%s1 + $0x10] sm:$0xff]
        %v282 = vld [vmem:[%s1 + $0x18] sm:$0xf]
        %v284 = vcombine.high %v278, %v278
        %vm285 = vcmask 23552
        %v287 = vsel %vm285, %v279, 0
        %v290 = vsel %vm285, %v280, 0
        %v293 = vsel %vm285, %v281, 0
        %v296 = vsel %vm285, %v282, 0
        %vm298 = vcmask 1042432
        %v299 = vsel %vm298, %v278, 0
        %v301 = vsel %vm298, %v284, 0
        %303 = vmatprep.subr.mxu0 %v301
        %304 = vmatpush1.msra.mxu0 %v299
        %305 = vmatprep.subr.mxu0 0.0
        %306 = vmatpush1.msra.mxu0 0.0
        %307 = vmatprep.subr.mxu0 0.0
        %308 = vmatpush1.msra.mxu0 0.0
        %309 = vmatprep.subr.mxu0 0.0
        %310 = vmatpush1.msra.mxu0 0.0
        %311 = vmatprep.subr.mxu0 0.0
        %312 = vmatpush1.msra.mxu0 0.0
        %313 = vmatprep.subr.mxu0 0.0
        %314 = vmatpush1.msra.mxu0 0.0
        %315 = vmatprep.subr.mxu0 0.0
        %316 = vmatpush1.msra.mxu0 0.0
        %317 = vmatprep.subr.mxu0 0.0
        %318 = vmatpush1.msra.mxu0 0.0
        %319 = vmatprep.subr.mxu0 0.0
        %320 = vmatpush1.msra.mxu0 0.0
        %321 = vmatprep.subr.mxu0 0.0
        %322 = vmatpush1.msra.mxu0 0.0
        %323 = vmatprep.subr.mxu0 0.0
        %324 = vmatpush1.msra.mxu0 0.0
        %325 = vmatprep.subr.mxu0 0.0
        %326 = vmatpush1.msra.mxu0 0.0
        %327 = vmatprep.subr.mxu0 0.0
        %328 = vmatpush1.msra.mxu0 0.0
        %329 = vmatprep.subr.mxu0 0.0
        %330 = vmatpush1.msra.mxu0 0.0
        %331 = vmatprep.subr.mxu0 0.0
        %332 = vmatpush1.msra.mxu0 0.0
        %333 = vmatprep.subr.mxu0 0.0
        %334 = vmatpush1.msra.mxu0 0.0
        %335 = vmatprep.subr.mxu0 0.0
        %336 = vmatpush1.msra.mxu0 0.0
        %337 = vmatprep.subr.mxu0 0.0
        %338 = vmatpush1.msra.mxu0 0.0
        %339 = vmatprep.subr.mxu0 0.0
        %340 = vmatpush1.msra.mxu0 0.0
        %341 = vmatprep.subr.mxu0 0.0
        %342 = vmatpush1.msra.mxu0 0.0
        %343 = vmatprep.subr.mxu0 0.0
        %344 = vmatpush1.msra.mxu0 0.0
        %345 = vmatprep.subr.mxu0 0.0
        %346 = vmatpush1.msra.mxu0 0.0
        %347 = vmatprep.subr.mxu0 0.0
        %348 = vmatpush1.msra.mxu0 0.0
        %349 = vmatprep.subr.mxu0 0.0
        %350 = vmatpush1.msra.mxu0 0.0
        %351 = vmatprep.subr.mxu0 0.0
        %352 = vmatpush1.msra.mxu0 0.0
        %353 = vmatprep.subr.mxu0 0.0
        %354 = vmatpush1.msra.mxu0 0.0
        %355 = vmatprep.subr.mxu0 0.0
        %356 = vmatpush1.msra.mxu0 0.0
        %357 = vmatprep.subr.mxu0 0.0
        %358 = vmatpush1.msra.mxu0 0.0
        %359 = vmatprep.subr.mxu0 0.0
        %360 = vmatpush1.msra.mxu0 0.0
        %361 = vmatprep.subr.mxu0 0.0
        %362 = vmatpush1.msra.mxu0 0.0
        %363 = vmatprep.subr.mxu0 0.0
        %364 = vmatpush1.msra.mxu0 0.0
        %365 = vmatprep.subr.mxu0 0.0
        %366 = vmatpush1.msra.mxu0 0.0
        %367 = vmatprep.mubr.f32.mxu0 0.0
        %368 = vmatmul.mubr.f32.gmra.mrb[0].mxu0 %v287
        %v369 = vpop.f32.mrb[0].mxu0
        %v370 = vadd.f32 0.0, %v369
        %v371 = vpop.f32.mrb[0].mxu0
        %v372 = vadd.f32 0.0, %v371
        %373 = vmatprep.mubr.f32.mxu0 0.0
        %374 = vmatmul.mubr.f32.gmra.mrb[0].mxu0 %v290
        %v375 = vpop.f32.mrb[0].mxu0
        %v376 = vadd.f32 0.0, %v375
        %v377 = vpop.f32.mrb[0].mxu0
        %v378 = vadd.f32 0.0, %v377
        %379 = vmatprep.mubr.f32.mxu0 0.0
        %380 = vmatmul.mubr.f32.gmra.mrb[0].mxu0 %v293
        %v381 = vpop.f32.mrb[0].mxu0
        %v382 = vadd.f32 0.0, %v381
        %v383 = vpop.f32.mrb[0].mxu0
        %v384 = vadd.f32 0.0, %v383
        %385 = vmatprep.mubr.f32.mxu0 0.0
        %386 = vmatmul.mubr.f32.gmra.mrb[0].mxu0 %v296
        %v387 = vpop.f32.mrb[0].mxu0
        %v388 = vadd.f32 0.0, %v387
        %v389 = vpop.f32.mrb[0].mxu0
        %v390 = vadd.f32 0.0, %v389
        %391 = vdwg.mxu0
        %v392 = vld [vmem:[%s2] sm:$0xff]
        %v393 = vld [vmem:[%s2 + $0x8] sm:$0xff]
        %v394 = vld [vmem:[%s2 + $0x10] sm:$0xff]
        %v395 = vld [vmem:[%s2 + $0x18] sm:$0xf]
        %397 = vset.pattern.permute.xlu0 0
        %398 = vperm.xlu0 %397, %v392
        %v399 = vpop.permute.xlu0 %398
        %v401 = vadd.f32 %v370, %v399
        %v402 = vadd.f32 %v372, %v399
        %vm403 = vcmp.gt.f32.partialorder %v401, 0.0
        %vm404 = vcmp.gt.f32.partialorder %v402, 0.0
        %v405 = vsel %vm403, 1, 0
        %v406 = vsel %vm404, 1, 0
        %v407 = vcvt.s32.f32 %v405
        %v408 = vcvt.s32.f32 %v406
        %v409 = vlaneseq
        %v410 = vshrl.u32 %v409, 7
        %v411 = vadd.s32 %v410, 8
        %v412 = vadd.s32 %v410, 16
        %v413 = vadd.s32 %v410, 24
        %vm414 = vcmp.ge.s32.totalorder %v410, 3
        %vm415 = vcmp.ge.s32.totalorder %v411, 3
        %vm416 = vcmp.ge.s32.totalorder %v412, 3
        %vm417 = vcmp.ge.s32.totalorder %v413, 3
        %vm418 = vcmp.lt.s32.totalorder %v410, 10
        %vm419 = vcmp.lt.s32.totalorder %v411, 10
        %vm420 = vcmp.lt.s32.totalorder %v412, 10
        %vm421 = vcmp.lt.s32.totalorder %v413, 10
        %vm422 = vmand %vm414, %vm418
        %vm423 = vmand %vm415, %vm419
        %vm424 = vmand %vm416, %vm420
        %vm425 = vmand %vm417, %vm421
        %v426 = vlaneseq
        %v427 = vshrl.u32 %v426, 7
        %v428 = vsub.s32 3, %v427
        %v429 = vrot.slane %v407, %v428
        %v430 = vlaneseq
        %v431 = vshrl.u32 %v430, 7
        %v432 = vsub.s32 3, %v431
        %v433 = vrot.slane %v408, %v432
        %v434 = vmul.f32 %v429, %v370
        %v435 = vmul.f32 %v433, %v372
        %v436 = vmul.f32 %v429, %v376
        %v437 = vmul.f32 %v433, %v378
        %v438 = vmul.f32 %v429, %v382
        %v439 = vmul.f32 %v433, %v384
        %v440 = vmul.f32 %v429, %v388
        %v441 = vmul.f32 %v433, %v390
        %v442 = vsel %vm422, %v370, %v434
        %v443 = vsel %vm422, %v372, %v435
        %v444 = vsel %vm423, %v376, %v436
        %v445 = vsel %vm423, %v378, %v437
        %v446 = vsel %vm424, %v382, %v438
        %v447 = vsel %vm424, %v384, %v439
        %v448 = vsel %vm425, %v388, %v440
        %v449 = vsel %vm425, %v390, %v441
        %451 = vset.pattern.permute.xlu0 0
        %452 = vperm.xlu0 %451, %v393
        %v453 = vpop.permute.xlu0 %452
        %456 = vset.pattern.permute.xlu0 0
        %457 = vperm.xlu0 %456, %v394
        %v458 = vpop.permute.xlu0 %457
        %461 = vset.pattern.permute.xlu0 0
        %462 = vperm.xlu0 %461, %v395
        %v463 = vpop.permute.xlu0 %462
        %v465 = vadd.f32 %v442, %v399
        %v466 = vadd.f32 %v443, %v399
        %v467 = vadd.f32 %v444, %v453
        %v468 = vadd.f32 %v445, %v453
        %v469 = vadd.f32 %v446, %v458
        %v470 = vadd.f32 %v447, %v458
        %v471 = vadd.f32 %v448, %v463
        %v472 = vadd.f32 %v449, %v463
        %v473 = vxor.u32 %v465, 2147483648
        %v474 = vxor.u32 %v466, 2147483648
        %v475 = vxor.u32 %v467, 2147483648
        %v476 = vxor.u32 %v468, 2147483648
        %v477 = vxor.u32 %v469, 2147483648
        %v478 = vxor.u32 %v470, 2147483648
        %v479 = vxor.u32 %v471, 2147483648
        %v480 = vxor.u32 %v472, 2147483648
        %v481 = vmul.f32 %v473, 1.442695
        %v482 = vpow.pop %v481
        %v483 = vmul.f32 %v474, 1.442695
        %v484 = vpow.pop %v483
        %v485 = vmul.f32 %v475, 1.442695
        %v486 = vpow.pop %v485
        %v487 = vmul.f32 %v476, 1.442695
        %v488 = vpow.pop %v487
        %v489 = vmul.f32 %v477, 1.442695
        %v490 = vpow.pop %v489
        %v491 = vmul.f32 %v478, 1.442695
        %v492 = vpow.pop %v491
        %v493 = vmul.f32 %v479, 1.442695
        %v494 = vpow.pop %v493
        %v495 = vmul.f32 %v480, 1.442695
        %v496 = vpow.pop %v495
        %v497 = vadd.f32 %v482, 1.0
        %v498 = vadd.f32 %v484, 1.0
        %v499 = vadd.f32 %v486, 1.0
        %v500 = vadd.f32 %v488, 1.0
        %v501 = vadd.f32 %v490, 1.0
        %v502 = vadd.f32 %v492, 1.0
        %v503 = vadd.f32 %v494, 1.0
        %v504 = vadd.f32 %v496, 1.0
        %v505 = vrcp.pop %v497
        %v506 = vmul.f32 1.0, %v505
        %v507 = vrcp.pop %v498
        %v508 = vmul.f32 1.0, %v507
        %v509 = vrcp.pop %v499
        %v510 = vmul.f32 1.0, %v509
        %v511 = vrcp.pop %v500
        %v512 = vmul.f32 1.0, %v511
        %v513 = vrcp.pop %v501
        %v514 = vmul.f32 1.0, %v513
        %v515 = vrcp.pop %v502
        %v516 = vmul.f32 1.0, %v515
        %v517 = vrcp.pop %v503
        %v518 = vmul.f32 1.0, %v517
        %v519 = vrcp.pop %v504
        %v520 = vmul.f32 1.0, %v519
        %vm521 = vcmp.lt.s32.totalorder %v410, 3
        %vm522 = vcmp.lt.s32.totalorder %v411, 3
        %vm523 = vcmp.lt.s32.totalorder %v412, 3
        %vm524 = vcmp.lt.s32.totalorder %v413, 3
        %v525 = vmul.f32 %v506, %v429
        %v526 = vmul.f32 %v508, %v433
        %v527 = vmul.f32 %v510, %v429
        %v528 = vmul.f32 %v512, %v433
        %v529 = vmul.f32 %v514, %v429
        %v530 = vmul.f32 %v516, %v433
        %v531 = vmul.f32 %v518, %v429
        %v532 = vmul.f32 %v520, %v433
        %v533 = vsel %vm521, %v525, %v506
        %v534 = vsel %vm521, %v526, %v508
        %v535 = vsel %vm522, %v527, %v510
        %v536 = vsel %vm522, %v528, %v512
        %v537 = vsel %vm523, %v529, %v514
        %v538 = vsel %vm523, %v530, %v516
        %v539 = vsel %vm524, %v531, %v518
        %v540 = vsel %vm524, %v532, %v520
        %541 = vst [vmem:[%s275] sm:$0xff] %v533
        %542 = vst [vmem:[%s275 + $0x8] sm:$0xff] %v534
        %543 = vst [vmem:[%s275 + $0x10] sm:$0xff] %v535
        %544 = vst [vmem:[%s275 + $0x18] sm:$0xff] %v536
        %545 = vst [vmem:[%s275 + $0x20] sm:$0xff] %v537
        %546 = vst [vmem:[%s275 + $0x28] sm:$0xff] %v538
        %547 = vst [vmem:[%s275 + $0x30] sm:$0xf] %v539
        %548 = vst [vmem:[%s275 + $0x38] sm:$0xf] %v540
        %v549 = vmul.f32 %v533, %v533
        %v550 = vmul.f32 %v534, %v534
        %v551 = vsel %vm298, %v549, 0.0
        %v552 = vrot.slane %v551, 4
        %v553 = vadd.f32 %v551, %v552
        %v554 = vrot.slane %v553, 2
        %v555 = vadd.f32 %v553, %v554
        %v556 = vrot.slane %v555, 1
        %v557 = vadd.f32 %v555, %v556
        %v558 = vsel %vm298, %v550, 0.0
        %v559 = vrot.slane %v558, 4
        %v560 = vadd.f32 %v558, %v559
        %v561 = vrot.slane %v560, 2
        %v562 = vadd.f32 %v560, %v561
        %v563 = vrot.slane %v562, 1
        %v564 = vadd.f32 %v562, %v563
        %v565 = vadd.f32 %v557, 1e-08
        %v566 = vadd.f32 %v564, 1e-08
        %v567 = vrsqrt.pop %v565
        %v568 = vrsqrt.pop %v566
        %v569 = vld [vmem:[%s3] sm:$0x3]
        %v571 = vsel %vm285, %v569, 0
        %v574 = vsel %vm298, %v533, 0
        %v577 = vsel %vm298, %v534, 0
        %579 = vmatprep.subr.mxu0 %v577
        %580 = vmatpush1.msra.mxu0 %v574
        %581 = vmatprep.subr.mxu0 0.0
        %582 = vmatpush1.msra.mxu0 0.0
        %583 = vmatprep.subr.mxu0 0.0
        %584 = vmatpush1.msra.mxu0 0.0
        %585 = vmatprep.subr.mxu0 0.0
        %586 = vmatpush1.msra.mxu0 0.0
        %587 = vmatprep.subr.mxu0 0.0
        %588 = vmatpush1.msra.mxu0 0.0
        %589 = vmatprep.subr.mxu0 0.0
        %590 = vmatpush1.msra.mxu0 0.0
        %591 = vmatprep.subr.mxu0 0.0
        %592 = vmatpush1.msra.mxu0 0.0
        %593 = vmatprep.subr.mxu0 0.0
        %594 = vmatpush1.msra.mxu0 0.0
        %595 = vmatprep.subr.mxu0 0.0
        %596 = vmatpush1.msra.mxu0 0.0
        %597 = vmatprep.subr.mxu0 0.0
        %598 = vmatpush1.msra.mxu0 0.0
        %599 = vmatprep.subr.mxu0 0.0
        %600 = vmatpush1.msra.mxu0 0.0
        %601 = vmatprep.subr.mxu0 0.0
        %602 = vmatpush1.msra.mxu0 0.0
        %603 = vmatprep.subr.mxu0 0.0
        %604 = vmatpush1.msra.mxu0 0.0
        %605 = vmatprep.subr.mxu0 0.0
        %606 = vmatpush1.msra.mxu0 0.0
        %607 = vmatprep.subr.mxu0 0.0
        %608 = vmatpush1.msra.mxu0 0.0
        %609 = vmatprep.subr.mxu0 0.0
        %610 = vmatpush1.msra.mxu0 0.0
        %611 = vmatprep.subr.mxu0 0.0
        %612 = vmatpush1.msra.mxu0 0.0
        %613 = vmatprep.subr.mxu0 0.0
        %614 = vmatpush1.msra.mxu0 0.0
        %615 = vmatprep.subr.mxu0 0.0
        %616 = vmatpush1.msra.mxu0 0.0
        %617 = vmatprep.subr.mxu0 0.0
        %618 = vmatpush1.msra.mxu0 0.0
        %619 = vmatprep.subr.mxu0 0.0
        %620 = vmatpush1.msra.mxu0 0.0
        %621 = vmatprep.subr.mxu0 0.0
        %622 = vmatpush1.msra.mxu0 0.0
        %623 = vmatprep.subr.mxu0 0.0
        %624 = vmatpush1.msra.mxu0 0.0
        %625 = vmatprep.subr.mxu0 0.0
        %626 = vmatpush1.msra.mxu0 0.0
        %627 = vmatprep.subr.mxu0 0.0
        %628 = vmatpush1.msra.mxu0 0.0
        %629 = vmatprep.subr.mxu0 0.0
        %630 = vmatpush1.msra.mxu0 0.0
        %631 = vmatprep.subr.mxu0 0.0
        %632 = vmatpush1.msra.mxu0 0.0
        %633 = vmatprep.subr.mxu0 0.0
        %634 = vmatpush1.msra.mxu0 0.0
        %635 = vmatprep.subr.mxu0 0.0
        %636 = vmatpush1.msra.mxu0 0.0
        %637 = vmatprep.subr.mxu0 0.0
        %638 = vmatpush1.msra.mxu0 0.0
        %639 = vmatprep.subr.mxu0 0.0
        %640 = vmatpush1.msra.mxu0 0.0
        %641 = vmatprep.subr.mxu0 0.0
        %642 = vmatpush1.msra.mxu0 0.0
        %643 = vmatprep.mubr.f32.mxu0 0.0
        %644 = vmatmul.mubr.f32.gmra.mrb[0].mxu0 %v571
        %v645 = vpop.f32.mrb[0].mxu0
        %v646 = vadd.f32 0.0, %v645
        %v647 = vpop.f32.mrb[0].mxu0
        %v648 = vadd.f32 0.0, %v647
        %649 = vdwg.mxu0
        %v650 = vmul.f32 %v646, %v567
        %v651 = vmul.f32 %v648, %v568
        %v654 = vcombine.low %v650, %v651
        %v656 = vunpack.c.l.s4 1983009808
        %v657 = vunpack.c.0.s8 %v656
        %v658 = vlaneseq
        %v659 = vshrl.u32 %v658, 7
        %v660 = vsub.s32 %v657, %v659
        %v661 = vrot.slane %v654, %v660
        %663 = vst [vmem:[%s256] sm:$0xf] %v661
        %s664 = smul.u32 2, %s25
        %p665 = scmp.lt.s32.totalorder %s24, 1
        %s666 = scalar_select %p665, %s24, 1
        %p667 = scmp.lt.s32.totalorder %s664, 1
        %s668 = scalar_select %p667, %s664, 1
        %s669 = smul.addr %s666, 8
        %s670 = sadd.s32 %s668, %s669
        %s671 = smul.addr %s670, 8
        %s672 = scalar_lea.vmem %s4, %s671
        %s673 = sand.u32 %s161, 1
        %s674 = scalar_lea.sflag [#allocation3], %s673
        %s675 = sand.u32 %s161, 1
        %s676 = smul.addr %s675, 4
        %s677 = scalar_lea.vmem [#allocation2], %s676
        // Predicated region
        $region37: #{tpu_custom_call.1} parent=35 // pred_check
          %p678 = pneg %p143
        $region38: #{tpu_custom_call.1} parent=35 // pred_check_branch
          %680 = sbr.rel (%p678) target = $region40
        $region39: #{tpu_custom_call.1} parent=35 // pred_region
          %s681 = smul.u32 2, %s25
        $region40: #{tpu_custom_call.1} parent=35 // pred_fallthru
          _
        // Predicated region
        $region41: #{tpu_custom_call.1} parent=35 // pred_check
          %p682 = pneg %p171
        $region42: #{tpu_custom_call.1} parent=35 // pred_check_branch
          %684 = sbr.rel (%p682) target = $region44
        $region43: #{tpu_custom_call.1} parent=35 // pred_region
          %s685 = smul.u32 2, %s25
          %s687 = ssub.s32 64, 64
          %688 = vsyncadd %s674, %s687
          %s689 = smul.addr %s24, 2
          %s690 = sadd.s32 %s685, %s689
          %s691 = smul.addr %s690, 32
          %s692 = scalar_lea.hbm %s5, %s691
          %s694 = sshll.u32 %s677, 4
          %s695 = int_to_ptr.vmem [resolvable:$true] %s694
          %697 = dma.vmem_to_hbm [thread:$0]  %s695, 64, %s692, %s674
        $region44: #{tpu_custom_call.1} parent=35 // pred_fallthru
          _
      $region36: #{tpu_custom_call.1} parent=5 // pred_fallthru
        _
      %p698 = scmp.le.s32.totalorder 2, %s15
      // Predicated region
      $region45: #{tpu_custom_call.1} parent=5 // pred_check
        %p699 = pneg %p698
      $region46: #{tpu_custom_call.1} parent=5 // pred_check_branch
        %701 = sbr.rel (%p699) target = $region48
      $region47: #{tpu_custom_call.1} parent=5 // pred_region
        %s702 = ssub.s32 %s15, 2
        // Predicated region
        $region49: #{tpu_custom_call.1} parent=47 // pred_check
          %p703 = pneg %p149
        $region50: #{tpu_custom_call.1} parent=47 // pred_check_branch
          %705 = sbr.rel (%p703) target = $region52
        $region51: #{tpu_custom_call.1} parent=47 // pred_region
          %s706 = smul.u32 2, %s27
          %p707 = scmp.lt.s32.totalorder %s26, 1
          %s708 = scalar_select %p707, %s26, 1
          %p709 = scmp.lt.s32.totalorder %s706, 1
          %s710 = scalar_select %p709, %s706, 1
          %s711 = smul.addr %s708, 8
          %s712 = sadd.s32 %s710, %s711
          %s713 = smul.addr %s712, 8
          %s714 = scalar_lea.vmem %s4, %s713
        $region52: #{tpu_custom_call.1} parent=47 // pred_fallthru
          _
        // Predicated region
        $region53: #{tpu_custom_call.1} parent=47 // pred_check
          %p715 = pneg %p177
        $region54: #{tpu_custom_call.1} parent=47 // pred_check_branch
          %717 = sbr.rel (%p715) target = $region56
        $region55: #{tpu_custom_call.1} parent=47 // pred_region
          %s718 = sand.u32 %s162, 1
          %s719 = scalar_lea.sflag [#allocation3], %s718
          %s720 = sand.u32 %s162, 1
          %s721 = smul.addr %s720, 4
          %s722 = scalar_lea.vmem [#allocation2], %s721
          %723 = dma.done %s719, 64
        $region56: #{tpu_custom_call.1} parent=47 // pred_fallthru
          _
      $region48: #{tpu_custom_call.1} parent=5 // pred_fallthru
        _
    $region6: #{tpu_custom_call.1} parent=1 // loop_footer
      %s19 = sadd.s32 1, %s15
    $region7: #{tpu_custom_call.1} parent=1 // loop_footer_branch
      %14 = sbr.rel target = $region3
    $region8: #{tpu_custom_call.1} parent=1 // loop_exit
      _
    %724 = vsyncpa [#allocation3], 1
    %s725 = scalar_lea.sflag [#allocation3], 1
    %726 = vsyncpa %s725, 1

</llo_original>
